<compile_context>
chip_gen: v7x
topology: tpu7x:2x2x1
jax: 0.10.0
libtpu: 0.0.40
codegen_flags: <defaults>
</compile_context>

<pallas_src>
import math

import jax
import jax.numpy as jnp
from jax.experimental import pallas as pl
from jax.experimental.pallas import tpu as pltpu
import numpy as np


def _add_pe_kernel(x_ref, pe_ref, o_ref):
    """out = x + pe.

    x_ref/o_ref: (B, ts, C) or (1, ts, C); pe_ref: (ts, C), broadcast over the
    leading (batch) axis.  pe is already in x's dtype, so the add runs native
    (bf16 on v6e/v7x, f32 otherwise) with a single cast on store.
    """
    o_ref[...] = (x_ref[...] + pe_ref[...]).astype(o_ref.dtype)


def _make_pe_table(seq_len: int, dmodel: int) -> jax.Array:
    """Sinusoidal PE table (seq_len, dmodel), f32, matching the PyTorch buffer."""
    pos = jnp.arange(seq_len, dtype=jnp.float32)[:, None]                 # (S, 1)
    div_term = jnp.exp(
        jnp.arange(0, dmodel, 2, dtype=jnp.float32) * (-math.log(10000.0) / dmodel)
    )                                                                     # (D//2,)
    angle = pos * div_term                                                # (S, D//2)
    # interleave: even cols = sin, odd cols = cos
    pe = jnp.stack([jnp.sin(angle), jnp.cos(angle)], axis=-1).reshape(seq_len, dmodel)
    return pe


def pos_encodings(x: jax.Array) -> jax.Array:
    """Apply sinusoidal positional encodings to x of shape (B, S, D)."""
    B, S, D = x.shape
    assert D % 2 == 0, "dmodel must be even (matches the PyTorch module)"

    # ---------------- Lane-dense re-layout (pad S if needed) ----------------
    # Make the last block dim a multiple of 128 so stores are unmasked vst.
    if D % 128 == 0:
        S_pad = S
        R, C = S_pad, D
    else:
        m = 128 // math.gcd(D, 128)           # smallest S multiple s.t. S*D % 128 == 0
        S_pad = ((S + m - 1) // m) * m
        R, C = (S_pad * D) // 128, 128

    # PE table built once (for the padded length), pre-cast to x's dtype so the
    # in-kernel add is dtype-native (bf16 add on v6e/v7x when x is bf16).
    pe = _make_pe_table(S_pad, D).astype(x.dtype)

    xp = x if S_pad == S else jnp.pad(x, ((0, 0), (0, S_pad - S), (0, 0)))
    x2 = xp.reshape(B, R, C)                  # per-batch (S_pad, D) slab flattened
    pe2 = pe.reshape(R, C)                    # flattened identically -> broadcast kept

    # ---------------- VMEM-aware block sizing (per TPU generation) ----------
    try:
        vmem_cap = int(pltpu.get_tpu_info().vmem_capacity_bytes)
    except Exception:                          # conservative default (v7x-sized)
        vmem_cap = 64 * 1024 * 1024
    vmem_limit = min((vmem_cap * 3) // 4, 96 * 1024 * 1024)   # 48 MiB on v7x, 96 MiB on v5e/v6e
    block_target = min(8 * 1024 * 1024, vmem_limit // 8)      # ~6 MiB v7x, ~8 MiB v5e/v6e

    itemsize = np.dtype(x.dtype).itemsize

    # ---------------- Grid / BlockSpec construction -------------------------
    min_rows = min(R, 8)
    fold_batch = (B * min_rows * C * itemsize) <= block_target

    if fold_batch:
        # Primary path: whole batch in one block, 1-D grid over seq tiles.
        target_rows = block_target // (B * C * itemsize)
        ts = min(R, max(min_rows, (target_rows // 8) * 8))
        grid = (pl.cdiv(R, ts),)
        in_specs = [
            pl.BlockSpec((B, ts, C), lambda s: (0, s, 0)),    # x (full batch per block)
            pl.BlockSpec((ts, C), lambda s: (s, 0)),          # pe (batch-invariant)
        ]
        out_specs = pl.BlockSpec((B, ts, C), lambda s: (0, s, 0))
        dims = ("parallel",)
    else:
        # Fallback for large B: per-batch blocks, seq tiles outer so the pe
        # tile's block index is constant across the inner batch loop.
        target_rows = block_target // (C * itemsize)
        ts = min(R, max(8, (target_rows // 8) * 8))
        grid = (pl.cdiv(R, ts), B)
        in_specs = [
            pl.BlockSpec((1, ts, C), lambda s, b: (b, s, 0)),  # x
            pl.BlockSpec((ts, C), lambda s, b: (s, 0)),        # pe (batch-invariant)
        ]
        out_specs = pl.BlockSpec((1, ts, C), lambda s, b: (b, s, 0))
        dims = ("parallel", "parallel")

    cost = pl.CostEstimate(
        flops=B * R * C,
        transcendentals=0,
        bytes_accessed=2 * B * R * C * itemsize + R * C * itemsize,
    )

    out = pl.pallas_call(
        _add_pe_kernel,
        out_shape=jax.ShapeDtypeStruct((B, R, C), x.dtype),
        grid_spec=pltpu.PrefetchScalarGridSpec(
            num_scalar_prefetch=0,
            grid=grid,
            in_specs=in_specs,
            out_specs=out_specs,
        ),
        compiler_params=pltpu.CompilerParams(
            dimension_semantics=dims,
            vmem_limit_bytes=vmem_limit,
        ),
        cost_estimate=cost,
    )(x2, pe2)

    out = out.reshape(B, S_pad, D)
    if S_pad != S:
        out = out[:, :S, :]
    return out


def _reference(x: np.ndarray) -> np.ndarray:
    """Pure-numpy reference matching the PyTorch buffer construction."""
    B, S, D = x.shape
    position = np.arange(S, dtype=np.float32)[:, None]           # (S, 1)
    div_term = np.exp(
        np.arange(0, D, 2, dtype=np.float32) * (-math.log(10000.0) / D)
    )                                                             # (D//2,)
    pe = np.zeros((S, D), dtype=np.float32)
    pe[:, 0::2] = np.sin(position * div_term)
    pe[:, 1::2] = np.cos(position * div_term)
    return x + pe[None, :, :]


if __name__ == "__main__":
    key = jax.random.PRNGKey(0)

    # Primary shape (matches the transformer-layer usage): batch=2, seq=8, dmodel=32.
    B, S, D = 2, 8, 32
    x = jax.random.normal(key, (B, S, D), dtype=jnp.float32)
    out = jax.block_until_ready(pos_encodings(x))
    np.testing.assert_allclose(np.asarray(out), _reference(np.asarray(x)), rtol=1e-5, atol=1e-5)

    # Awkward shape exercising the pad-to-lane-dense path (S=5, D=24).
    key2 = jax.random.PRNGKey(0)
    x2 = jax.random.normal(key2, (2, 5, 24), dtype=jnp.float32)
    out2 = jax.block_until_ready(pos_encodings(x2))
    np.testing.assert_allclose(np.asarray(out2), _reference(np.asarray(x2)), rtol=1e-5, atol=1e-5)

    print("KERNEL_OK")
</pallas_src>

<mosaic_0001>
module attributes {stable_mosaic.version = 11 : i64} {
  func.func @_add_pe_kernel(%arg0: i32, %arg1: memref<2x2x128xf32, #tpu.memory_space<vmem>>, %arg2: memref<2x128xf32, #tpu.memory_space<vmem>>, %arg3: memref<2x2x128xf32, #tpu.memory_space<vmem>>) attributes {dimension_semantics = [#tpu.dimension_semantics<parallel>], iteration_bounds = array<i64: 1>, scalar_prefetch = 0 : i64, scratch_operands = 0 : i64, tpu.core_type = #tpu.core_type<tc>, window_params = [{transform_indices = @transform_0, window_bounds = array<i64: 2, 2, 128>}, {transform_indices = @transform_1, window_bounds = array<i64: 2, 128>}, {transform_indices = @transform_2, window_bounds = array<i64: 2, 2, 128>}]} {
    %c0 = arith.constant 0 : index
    %c0_0 = arith.constant 0 : index
    %c0_1 = arith.constant 0 : index
    %0 = vector.load %arg1[%c0, %c0_0, %c0_1] : memref<2x2x128xf32, #tpu.memory_space<vmem>>, vector<2x2x128xf32>
    %c0_2 = arith.constant 0 : index
    %c0_3 = arith.constant 0 : index
    %1 = vector.load %arg2[%c0_2, %c0_3] : memref<2x128xf32, #tpu.memory_space<vmem>>, vector<2x128xf32>
    %2 = vector.shape_cast %1 : vector<2x128xf32> to vector<1x2x128xf32>
    %3 = vector.broadcast %2 : vector<1x2x128xf32> to vector<2x2x128xf32>
    %4 = arith.addf %0, %3 : vector<2x2x128xf32>
    %c0_4 = arith.constant 0 : index
    %c0_5 = arith.constant 0 : index
    %c0_6 = arith.constant 0 : index
    %5 = vector.load %arg3[%c0_4, %c0_5, %c0_6] : memref<2x2x128xf32, #tpu.memory_space<vmem>>, vector<2x2x128xf32>
    tpu.vector_store %arg3[%c0_4, %c0_5, %c0_6], %4 {strides = array<i32>} : memref<2x2x128xf32, #tpu.memory_space<vmem>>, vector<2x2x128xf32>,
    return
  }
  func.func @transform_0(%arg0: i32) -> (i32, i32, i32) {
    %c0_i32 = arith.constant 0 : i32
    %c0_i32_0 = arith.constant 0 : i32
    %c0_i32_1 = arith.constant 0 : i32
    return %c0_i32, %arg0, %c0_i32_0 : i32, i32, i32
  }
  func.func @transform_1(%arg0: i32) -> (i32, i32) {
    %c0_i32 = arith.constant 0 : i32
    %c0_i32_0 = arith.constant 0 : i32
    return %arg0, %c0_i32 : i32, i32
  }
  func.func @transform_2(%arg0: i32) -> (i32, i32, i32) {
    %c0_i32 = arith.constant 0 : i32
    %c0_i32_0 = arith.constant 0 : i32
    %c0_i32_1 = arith.constant 0 : i32
    return %c0_i32, %arg0, %c0_i32_0 : i32, i32, i32
  }
}

</mosaic_0001>

<llo_original>
// kernel: tpu_custom_call.1
$region0: #{tpu_custom_call.1}
  #allocation0 [shape = 'u32[]', space=smem, size = 0x4, offset = 0x4, fixed_abs, tag = 'smem constant byte address 0x4 - core index']
  #allocation1 [shape = 'u32[144,128]{1,0:T(1,128)}', space=vmem, size = 0x12000, scoped, tag = 'internal scratch']
  %s0 = inlined_call_operand.hbm [shape: f32[2,2,128], index: 0, kind: input, shape index: {}]
  %s1 = inlined_call_operand.vmem [shape: f32[2,128], index: 1, kind: input, shape index: {}]
  %s2 = inlined_call_operand.hbm [shape: f32[2,2,128], index: 2, kind: output, shape index: {}]
  %s3 = sld [smem:[#allocation0]]
  $region22: #{tpu_custom_call.1} parent=0
    _
  %s5 = ssub.s32 1, %s3
  %s6 = scalar_select 0, %s5, %s3
  $region1: #{tpu_custom_call.1} parent=0
    #allocation2 [shape = 'u8[2048]{0}', space=vmem, size = 0x800, scoped, tag = 'input window, operand 0, single buffered']
    #allocation3 [shape = 's32[1]{0}', space=sflag, size = 0x4, scoped, tag = 'scoped memory for tpu_custom_call.1']
    #allocation4 [shape = 's32[1]{0}', space=sflag, size = 0x4, scoped, tag = 'scoped memory for tpu_custom_call.1']
    #allocation5 [shape = 'u8[2048]{0}', space=vmem, size = 0x800, scoped, tag = 'output window, operand 0, single buffered']
    %7 = vsyncpa [#allocation3], 0
    %8 = vsyncpa [#allocation4], 0
    // Predicated region
    $region2: #{tpu_custom_call.1} parent=1 // pred_check
      _
    $region3: #{tpu_custom_call.1} parent=1 // pred_check_branch
      %10 = sbr.rel (0) target = $region5
    $region4: #{tpu_custom_call.1} parent=1 // pred_region
      %s12 = ssub.s32 64, 64
      %13 = vsyncadd [#allocation3], %s12
      %s14 = sshll.u32 [#allocation2], 4
      %s15 = int_to_ptr.vmem [resolvable:$true] %s14
      %20 = dma.hbm_to_vmem [thread:$0]  %s0, 64, %s15, [#allocation3], 32, 32, 2
    $region5: #{tpu_custom_call.1} parent=1 // pred_fallthru
      _
    // Predicated region
    $region6: #{tpu_custom_call.1} parent=1 // pred_check
      _
    $region7: #{tpu_custom_call.1} parent=1 // pred_check_branch
      %22 = sbr.rel (0) target = $region9
    $region8: #{tpu_custom_call.1} parent=1 // pred_region
      _
    $region9: #{tpu_custom_call.1} parent=1 // pred_fallthru
      _
    // Predicated region
    $region10: #{tpu_custom_call.1} parent=1 // pred_check
      _
    $region11: #{tpu_custom_call.1} parent=1 // pred_check_branch
      %24 = sbr.rel (0) target = $region13
    $region12: #{tpu_custom_call.1} parent=1 // pred_region
      %25 = dma.done [#allocation3], 64
    $region13: #{tpu_custom_call.1} parent=1 // pred_fallthru
      _
    %v26 = vld [vmem:[#allocation2] sm:$0x3]
    %v27 = vld [vmem:[#allocation2 + $0x2] sm:$0x3]
    %v28 = vld [vmem:[%s1] sm:$0x3]
    %v29 = vadd.f32 %v26, %v28
    %v30 = vadd.f32 %v27, %v28
    %31 = vst [vmem:[#allocation5] sm:$0x3] %v29
    %32 = vst [vmem:[#allocation5 + $0x2] sm:$0x3] %v30
    // Predicated region
    $region14: #{tpu_custom_call.1} parent=1 // pred_check
      _
    $region15: #{tpu_custom_call.1} parent=1 // pred_check_branch
      %34 = sbr.rel (0) target = $region17
    $region16: #{tpu_custom_call.1} parent=1 // pred_region
      %s36 = ssub.s32 64, 64
      %37 = vsyncadd [#allocation4], %s36
      %s38 = sshll.u32 [#allocation5], 4
      %s39 = int_to_ptr.vmem [resolvable:$true] %s38
      %44 = dma.vmem_to_hbm [thread:$0]  %s39, 64, %s2, [#allocation4], 32, 32, 2
    $region17: #{tpu_custom_call.1} parent=1 // pred_fallthru
      _
    // Predicated region
    $region18: #{tpu_custom_call.1} parent=1 // pred_check
      _
    $region19: #{tpu_custom_call.1} parent=1 // pred_check_branch
      %46 = sbr.rel (0) target = $region21
    $region20: #{tpu_custom_call.1} parent=1 // pred_region
      %47 = dma.done [#allocation4], 64
    $region21: #{tpu_custom_call.1} parent=1 // pred_fallthru
      _
    %48 = vsyncpa [#allocation3], 1
    %49 = vsyncpa [#allocation4], 1

</llo_original>
